<compile_context>
chip_gen: v7x
topology: tpu7x:2x2x1
jax: 0.10.0
libtpu: 0.0.40
codegen_flags: <defaults>
</compile_context>

<pallas_src>
import functools

import jax
import jax.numpy as jnp
from jax import lax
from jax.experimental import pallas as pl
from jax.experimental.pallas import tpu as pltpu


def _round_up(x, m):
    return ((x + m - 1) // m) * m


def _nt_xent_lse_kernel(q_ref, k_ref, lse_ref, m_scr, l_scr, *, m_valid, inv_temp):
    """Online row-wise logsumexp of the scaled cosine-similarity matrix, excluding the
    diagonal (self-similarity) and padded columns.

    grid = (num_row_tiles, num_col_tiles); the column axis is the innermost,
    carried ("arbitrary") reduction axis.
    """
    qi = pl.program_id(0)
    ki = pl.program_id(1)

    @pl.when(ki == 0)
    def _init():
        m_scr[...] = jnp.full_like(m_scr, -jnp.inf)
        l_scr[...] = jnp.zeros_like(l_scr)

    # (Tq, D) x (Tk, D) -> (Tq, Tk) on the MXU; contracting dim = feature (lane)
    # axis of both operands, so no explicit transpose / XLU copy is needed.
    s = lax.dot_general(
        q_ref[...], k_ref[...],
        dimension_numbers=(((1,), (1,)), ((), ())),
        preferred_element_type=jnp.float32,
    ) * jnp.float32(inv_temp)

    tq, tk = s.shape
    row_g = qi * tq + lax.broadcasted_iota(jnp.int32, (tq, tk), 0)
    col_g = ki * tk + lax.broadcasted_iota(jnp.int32, (tq, tk), 1)
    # Mask the diagonal (self-similarity) and any padded columns of this tile.
    s = jnp.where((row_g == col_g) | (col_g >= m_valid), jnp.float32(-1e30), s)

    m_prev = m_scr[...]                                           # (Tq, 1)
    m_new = jnp.maximum(m_prev, jnp.max(s, axis=-1, keepdims=True))
    alpha = jnp.exp(m_prev - m_new)
    l_scr[...] = alpha * l_scr[...] + jnp.sum(jnp.exp(s - m_new), axis=-1,
                                              keepdims=True)
    m_scr[...] = m_new

    @pl.when(ki == pl.num_programs(1) - 1)
    def _finalize():
        lse_ref[...] = m_scr[...] + jnp.log(l_scr[...])


def nt_xent_loss(z_i, z_j, temperature, *, tile=256, compute_dtype=None):
    """NT-Xent loss.  z_i, z_j: (N, D).  Returns a scalar (f32).

    `tile` is the row/column tile size of the similarity matrix (default 256 fits
    comfortably in scoped VMEM on v5e/v6e/v7x).  `compute_dtype` controls the
    matmul operand dtype (e.g. jnp.bfloat16 for MXU-bound large-D cases); the
    accumulation and softmax statistics stay in f32.
    """
    n, d = z_i.shape
    assert z_j.shape == (n, d)
    m = 2 * n
    if compute_dtype is None:
        compute_dtype = z_i.dtype

    # ---- O(M*D) prologue (negligible vs the O(M^2*D) kernel) ----------------
    p = jnp.concatenate([z_i, z_j], axis=0).astype(jnp.float32)            # (M, D)
    norm = jnp.sqrt(jnp.sum(p * p, axis=-1, keepdims=True))
    pn = p / jnp.maximum(norm, 1e-8)     # eps guard as in torch CosineSimilarity
    # Positive logits sim[r, (r+N) mod M] are identical for the two halves.
    pos_sum = 2.0 * jnp.sum(pn[:n] * pn[n:]) / jnp.float32(temperature)    # scalar

    # ---- pad rows so the tile evenly divides the (padded) 2N dimension ------
    tile = max(8, _round_up(int(tile), 8))
    tile = min(tile, _round_up(m, 8))
    m_pad = _round_up(m, tile)
    pn_k = pn.astype(compute_dtype)
    if m_pad != m:
        pn_k = jnp.pad(pn_k, ((0, m_pad - m), (0, 0)))
    nq = m_pad // tile
    nk = m_pad // tile

    kernel = functools.partial(
        _nt_xent_lse_kernel, m_valid=m, inv_temp=1.0 / float(temperature))

    itemsize = jnp.dtype(compute_dtype).itemsize
    # Double-buffered row + column tiles, the (T, T) f32 similarity tile, plus headroom.
    needed = 2 * 2 * tile * d * itemsize + 4 * tile * tile + 16 * tile
    vmem_limit = int(min(max(4 * needed, 32 * 1024 * 1024), 64 * 1024 * 1024))

    lse = pl.pallas_call(
        kernel,
        out_shape=jax.ShapeDtypeStruct((m_pad, 1), jnp.float32),
        grid_spec=pltpu.PrefetchScalarGridSpec(
            num_scalar_prefetch=0,
            grid=(nq, nk),
            in_specs=[
                pl.BlockSpec((tile, d), lambda qi, ki: (qi, 0)),   # resident row tile
                pl.BlockSpec((tile, d), lambda qi, ki: (ki, 0)),   # streamed column tile
            ],
            out_specs=pl.BlockSpec((tile, 1), lambda qi, ki: (qi, 0)),
            scratch_shapes=[
                pltpu.VMEM((tile, 1), jnp.float32),   # running max
                pltpu.VMEM((tile, 1), jnp.float32),   # running sum
            ],
        ),
        compiler_params=pltpu.CompilerParams(
            dimension_semantics=("parallel", "arbitrary"),
            vmem_limit_bytes=vmem_limit,
        ),
        cost_estimate=pl.CostEstimate(
            flops=2 * m_pad * m_pad * d,
            transcendentals=m_pad * m_pad,
            bytes_accessed=(nq * m_pad * d + m_pad * d) * itemsize + m_pad * 4,
        ),
    )(pn_k, pn_k)

    # CrossEntropyLoss(reduction='sum') with label 0, then / (2N).
    return (jnp.sum(lse[:m, 0]) - pos_sum) / jnp.float32(m)


def _reference_loss(z_i, z_j, temperature):
    # Pure-JAX reference mirroring the PyTorch forward.
    n = z_i.shape[0]
    p = jnp.concatenate([z_i, z_j], axis=0).astype(jnp.float32)
    pn = p / jnp.maximum(jnp.linalg.norm(p, axis=-1, keepdims=True), 1e-8)
    sim = (pn @ pn.T) / temperature
    m = 2 * n
    idx = jnp.arange(m)
    pos = sim[idx, (idx + n) % m]
    sim_nd = jnp.where(jnp.eye(m, dtype=bool), -jnp.inf, sim)
    lse = jax.scipy.special.logsumexp(sim_nd, axis=-1)
    return jnp.sum(lse - pos) / m


if __name__ == "__main__":
    # Small SimCLR-like shapes.  N = 60 is deliberately not a tile multiple so the
    # padded-row/padded-column masking path is exercised; tile=64 gives a (2, 2)
    # grid so the online-logsumexp accumulation and diagonal-tile masking run too.
    batch_size = 60
    hidden = 128
    temperature = 0.5

    key = jax.random.PRNGKey(0)
    k1, k2 = jax.random.split(key)
    z_i = jax.random.normal(k1, (batch_size, hidden), dtype=jnp.float32)
    z_j = jax.random.normal(k2, (batch_size, hidden), dtype=jnp.float32)

    loss = jax.block_until_ready(nt_xent_loss(z_i, z_j, temperature, tile=64))
    ref = jax.block_until_ready(_reference_loss(z_i, z_j, temperature))
    assert jnp.allclose(loss, ref, rtol=1e-4, atol=1e-4), (loss, ref)
    print("KERNEL_OK")
</pallas_src>

<mosaic_0001>
module attributes {stable_mosaic.version = 11 : i64} {
  func.func @_nt_xent_lse_kernel(%arg0: i32, %arg1: i32, %arg2: memref<64x128xf32, #tpu.memory_space<vmem>>, %arg3: memref<64x128xf32, #tpu.memory_space<vmem>>, %arg4: memref<64x1xf32, #tpu.memory_space<vmem>>, %arg5: memref<64x1xf32, #tpu.memory_space<vmem>>, %arg6: memref<64x1xf32, #tpu.memory_space<vmem>>) attributes {dimension_semantics = [#tpu.dimension_semantics<parallel>, #tpu.dimension_semantics<arbitrary>], iteration_bounds = array<i64: 2, 2>, scalar_prefetch = 0 : i64, scratch_operands = 2 : i64, tpu.core_type = #tpu.core_type<tc>, window_params = [{transform_indices = @transform_0, window_bounds = array<i64: 64, 128>}, {transform_indices = @transform_1, window_bounds = array<i64: 64, 128>}, {transform_indices = @transform_2, window_bounds = array<i64: 64, 1>}]} {
    %c0_i32 = arith.constant 0 : i32
    %0 = arith.cmpi eq, %arg1, %c0_i32 : i32
    %1 = arith.extui %0 : i1 to i32
    %c0_i32_0 = arith.constant 0 : i32
    %2 = arith.cmpi ne, %1, %c0_i32_0 : i32
    scf.if %2 {
      %cst_18 = arith.constant 0xFF800000 : f32
      %41 = vector.broadcast %cst_18 : f32 to vector<64x1xf32>
      %c0_19 = arith.constant 0 : index
      %c0_20 = arith.constant 0 : index
      %42 = vector.load %arg5[%c0_19, %c0_20] : memref<64x1xf32, #tpu.memory_space<vmem>>, vector<64x1xf32>
      tpu.vector_store %arg5[%c0_19, %c0_20], %41 {strides = array<i32>} : memref<64x1xf32, #tpu.memory_space<vmem>>, vector<64x1xf32>,
      %cst_21 = arith.constant 0.000000e+00 : f32
      %43 = vector.broadcast %cst_21 : f32 to vector<64x1xf32>
      %c0_22 = arith.constant 0 : index
      %c0_23 = arith.constant 0 : index
      %44 = vector.load %arg6[%c0_22, %c0_23] : memref<64x1xf32, #tpu.memory_space<vmem>>, vector<64x1xf32>
      tpu.vector_store %arg6[%c0_22, %c0_23], %43 {strides = array<i32>} : memref<64x1xf32, #tpu.memory_space<vmem>>, vector<64x1xf32>,
    } else {
    }
    %c0 = arith.constant 0 : index
    %c0_1 = arith.constant 0 : index
    %3 = vector.load %arg2[%c0, %c0_1] : memref<64x128xf32, #tpu.memory_space<vmem>>, vector<64x128xf32>
    %c0_2 = arith.constant 0 : index
    %c0_3 = arith.constant 0 : index
    %4 = vector.load %arg3[%c0_2, %c0_3] : memref<64x128xf32, #tpu.memory_space<vmem>>, vector<64x128xf32>
    %cst = arith.constant dense<0.000000e+00> : vector<64x64xf32>
    %5 = tpu.matmul %3, %4, %cst {dimension_numbers = #tpu.dot_dimension_numbers<[1], [1], [0], [0], [0, 0, 1, 0], [], []>} : vector<64x128xf32>, vector<64x128xf32>, vector<64x64xf32> -> vector<64x64xf32>
    %cst_4 = arith.constant 2.000000e+00 : f32
    %6 = vector.broadcast %cst_4 : f32 to vector<64x64xf32>
    %7 = arith.mulf %5, %6 : vector<64x64xf32>
    %c64_i32 = arith.constant 64 : i32
    %8 = arith.muli %arg0, %c64_i32 : i32
    %9 = tpu.iota {dimensions = array<i32: 0>} : vector<64x64xi32>
    %10 = vector.broadcast %8 : i32 to vector<64x64xi32>
    %11 = arith.addi %10, %9 : vector<64x64xi32>
    %c64_i32_5 = arith.constant 64 : i32
    %12 = arith.muli %arg1, %c64_i32_5 : i32
    %13 = tpu.iota {dimensions = array<i32: 1>} : vector<64x64xi32>
    %14 = vector.broadcast %12 : i32 to vector<64x64xi32>
    %15 = arith.addi %14, %13 : vector<64x64xi32>
    %16 = arith.cmpi eq, %11, %15 : vector<64x64xi32>
    %c120_i32 = arith.constant 120 : i32
    %17 = vector.broadcast %c120_i32 : i32 to vector<64x64xi32>
    %18 = arith.cmpi sge, %15, %17 : vector<64x64xi32>
    %19 = arith.ori %16, %18 : vector<64x64xi1>
    %cst_6 = arith.constant -1.000000e+30 : f32
    %20 = vector.broadcast %cst_6 : f32 to vector<64x64xf32>
    %21 = arith.select %19, %20, %7 : vector<64x64xi1>, vector<64x64xf32>
    %c0_7 = arith.constant 0 : index
    %c0_8 = arith.constant 0 : index
    %22 = vector.load %arg5[%c0_7, %c0_8] : memref<64x1xf32, #tpu.memory_space<vmem>>, vector<64x1xf32>
    %cst_9 = arith.constant dense<0xFF800000> : vector<64xf32>
    %23 = vector.multi_reduction <maximumf>, %21, %cst_9 [1] : vector<64x64xf32> to vector<64xf32>
    %24 = vector.shape_cast %23 : vector<64xf32> to vector<64x1xf32>
    %25 = arith.maximumf %22, %24 : vector<64x1xf32>
    %26 = arith.subf %22, %25 : vector<64x1xf32>
    %27 = math.exp %26 : vector<64x1xf32>
    %c0_10 = arith.constant 0 : index
    %c0_11 = arith.constant 0 : index
    %28 = vector.load %arg6[%c0_10, %c0_11] : memref<64x1xf32, #tpu.memory_space<vmem>>, vector<64x1xf32>
    %29 = arith.mulf %27, %28 : vector<64x1xf32>
    %30 = vector.broadcast %25 : vector<64x1xf32> to vector<64x64xf32>
    %31 = arith.subf %21, %30 : vector<64x64xf32>
    %32 = math.exp %31 : vector<64x64xf32>
    %cst_12 = arith.constant dense<0.000000e+00> : vector<64xf32>
    %33 = vector.multi_reduction <add>, %32, %cst_12 [1] : vector<64x64xf32> to vector<64xf32>
    %34 = vector.shape_cast %33 : vector<64xf32> to vector<64x1xf32>
    %35 = arith.addf %29, %34 : vector<64x1xf32>
    %c0_13 = arith.constant 0 : index
    %c0_14 = arith.constant 0 : index
    %36 = vector.load %arg6[%c0_13, %c0_14] : memref<64x1xf32, #tpu.memory_space<vmem>>, vector<64x1xf32>
    tpu.vector_store %arg6[%c0_13, %c0_14], %35 {strides = array<i32>} : memref<64x1xf32, #tpu.memory_space<vmem>>, vector<64x1xf32>,
    %c0_15 = arith.constant 0 : index
    %c0_16 = arith.constant 0 : index
    %37 = vector.load %arg5[%c0_15, %c0_16] : memref<64x1xf32, #tpu.memory_space<vmem>>, vector<64x1xf32>
    tpu.vector_store %arg5[%c0_15, %c0_16], %25 {strides = array<i32>} : memref<64x1xf32, #tpu.memory_space<vmem>>, vector<64x1xf32>,
    %c1_i32 = arith.constant 1 : i32
    %38 = arith.cmpi eq, %arg1, %c1_i32 : i32
    %39 = arith.extui %38 : i1 to i32
    %c0_i32_17 = arith.constant 0 : i32
    %40 = arith.cmpi ne, %39, %c0_i32_17 : i32
    scf.if %40 {
      %c0_18 = arith.constant 0 : index
      %c0_19 = arith.constant 0 : index
      %41 = vector.load %arg5[%c0_18, %c0_19] : memref<64x1xf32, #tpu.memory_space<vmem>>, vector<64x1xf32>
      %c0_20 = arith.constant 0 : index
      %c0_21 = arith.constant 0 : index
      %42 = vector.load %arg6[%c0_20, %c0_21] : memref<64x1xf32, #tpu.memory_space<vmem>>, vector<64x1xf32>
      %43 = math.log %42 : vector<64x1xf32>
      %44 = arith.addf %41, %43 : vector<64x1xf32>
      %c0_22 = arith.constant 0 : index
      %c0_23 = arith.constant 0 : index
      %45 = vector.load %arg4[%c0_22, %c0_23] : memref<64x1xf32, #tpu.memory_space<vmem>>, vector<64x1xf32>
      tpu.vector_store %arg4[%c0_22, %c0_23], %44 {strides = array<i32>} : memref<64x1xf32, #tpu.memory_space<vmem>>, vector<64x1xf32>,
    } else {
    }
    return
  }
  func.func @transform_0(%arg0: i32, %arg1: i32) -> (i32, i32) {
    %c0_i32 = arith.constant 0 : i32
    %c0_i32_0 = arith.constant 0 : i32
    return %arg0, %c0_i32 : i32, i32
  }
  func.func @transform_1(%arg0: i32, %arg1: i32) -> (i32, i32) {
    %c0_i32 = arith.constant 0 : i32
    %c0_i32_0 = arith.constant 0 : i32
    return %arg1, %c0_i32 : i32, i32
  }
  func.func @transform_2(%arg0: i32, %arg1: i32) -> (i32, i32) {
    %c0_i32 = arith.constant 0 : i32
    %c0_i32_0 = arith.constant 0 : i32
    return %arg0, %c0_i32 : i32, i32
  }
}

</mosaic_0001>

<llo_original>
// kernel: tpu_custom_call.1
$region0: #{tpu_custom_call.1}
  #allocation0 [shape = 'u32[]', space=smem, size = 0x4, offset = 0x4, fixed_abs, tag = 'smem constant byte address 0x4 - core index']
  #allocation1 [shape = 'u32[144,128]{1,0:T(1,128)}', space=vmem, size = 0x12000, scoped, tag = 'internal scratch']
  #allocation2 [shape = 'f32[64,1]{1,0:T(8,128)}', space=vmem, size = 0x8000, scoped, tag = 'scratch operand']
  #allocation3 [shape = 'f32[64,1]{1,0:T(8,128)}', space=vmem, size = 0x8000, scoped, tag = 'scratch operand']
  %s0 = inlined_call_operand.hbm [shape: f32[128,128], index: 0, kind: input, shape index: {}]
  %s1 = inlined_call_operand.hbm [shape: f32[128,128], index: 1, kind: input, shape index: {}]
  %s2 = inlined_call_operand.vmem [shape: f32[128,1], index: 2, kind: output, shape index: {}]
  %s3 = sld [smem:[#allocation0]]
  $region57: #{tpu_custom_call.1} parent=0
    _
  %s5 = ssub.s32 1, %s3
  %s6 = scalar_select 0, %s5, %s3
  $region1: #{tpu_custom_call.1} parent=0
    #allocation4 [shape = 'u8[65536]{0}', space=vmem, size = 0x10000, scoped, tag = 'input window, operand 0']
    #allocation5 [shape = 's32[2]{0}', space=sflag, size = 0x8, scoped, tag = 'scoped memory for tpu_custom_call.1']
    #allocation6 [shape = 'u8[65536]{0}', space=vmem, size = 0x10000, scoped, tag = 'input window, operand 1']
    #allocation7 [shape = 's32[2]{0}', space=sflag, size = 0x8, scoped, tag = 'scoped memory for tpu_custom_call.1']
    %7 = vsyncpa [#allocation5], 0
    %s8 = scalar_lea.sflag [#allocation5], 1
    %9 = vsyncpa %s8, 0
    %10 = vsyncpa [#allocation7], 0
    %s11 = scalar_lea.sflag [#allocation7], 1
    %12 = vsyncpa %s11, 0
    loop: start=0, step=1, limit=6
    $region2: #{tpu_custom_call.1} parent=1 // loop_pre_header
      _
    $region3: #{tpu_custom_call.1} parent=1 // loop_header
      %s14 = sphi 0, %s18
      %p15 = scmp.ge.s32.totalorder %s14, 6
      %s21 = sphi 0, %s33
      %s22 = sphi 0, %s29
      %s23 = sphi 0, %s21
      %s24 = sphi 0, %s22
      %s25 = sphi 0, %s23
      %s26 = sphi 0, %s24
      %s36 = sphi 0, %s38
      %s39 = sphi 0, %s36
      %s40 = sphi 0, %s39
      %s56 = sphi 0, %s40
      %s62 = sphi 0, %s64
      %s65 = sphi 0, %s62
      %s66 = sphi 0, %s65
      %s82 = sphi 0, %s66
      %s88 = sphi 0, %s90
      %s91 = sphi 0, %s88
      %s92 = sphi 0, %s91
      %s108 = sphi 0, %s92
    $region4: #{tpu_custom_call.1} parent=1 // loop_header_branch
      %17 = sbr.rel (%p15) target = $region8
    $region5: #{tpu_custom_call.1} parent=1 // loop_body
      %s19 = ssub.s32 %s14, 1
      %s20 = ssub.s32 %s14, 2
      %s27 = sadd.s32 1, %s22
      %p28 = scmp.ge.s32.totalorder %s27, 2
      %s29 = scalar_select %p28, 0, %s27
      %s30 = sadd.s32 1, %s21
      %s31 = scalar_select %p28, %s30, %s21
      %p32 = scmp.ge.s32.totalorder %s31, 2
      %s33 = scalar_select %p32, 0, %s31
      %s34 = ssub.s32 %s21, %s33
      %p35 = scmp.eq.s32.totalorder %s34, 0
      %s37 = sadd.s32 %s36, 1
      %s38 = scalar_select %p35, %s36, %s37
      %p41 = pneg %p35
      %p42 = scmp.eq.s32.totalorder %s14, 3
      %p43 = por %p41, %p42
      %p44 = scmp.ne.s32.totalorder %s36, %s39
      %p45 = scmp.eq.s32.totalorder %s14, 0
      %p46 = por %p44, %p45
      %p47 = scmp.ne.s32.totalorder %s36, %s39
      %p48 = scmp.eq.s32.totalorder %s19, 3
      %p49 = por %p47, %p48
      %p50 = scmp.ne.s32.totalorder %s39, %s40
      %p51 = scmp.eq.s32.totalorder %s19, 0
      %p52 = por %p50, %p51
      %p53 = scmp.ne.s32.totalorder %s39, %s40
      %p54 = scmp.eq.s32.totalorder %s20, 3
      %p55 = por %p53, %p54
      %p57 = scmp.ne.s32.totalorder %s40, %s56
      %p58 = scmp.eq.s32.totalorder %s20, 0
      %p59 = por %p57, %p58
      %s60 = ssub.s32 %s22, %s29
      %p61 = scmp.eq.s32.totalorder %s60, 0
      %s63 = sadd.s32 %s62, 1
      %s64 = scalar_select %p61, %s62, %s63
      %p67 = pneg %p61
      %p68 = scmp.eq.s32.totalorder %s14, 3
      %p69 = por %p67, %p68
      %p70 = scmp.ne.s32.totalorder %s62, %s65
      %p71 = scmp.eq.s32.totalorder %s14, 0
      %p72 = por %p70, %p71
      %p73 = scmp.ne.s32.totalorder %s62, %s65
      %p74 = scmp.eq.s32.totalorder %s19, 3
      %p75 = por %p73, %p74
      %p76 = scmp.ne.s32.totalorder %s65, %s66
      %p77 = scmp.eq.s32.totalorder %s19, 0
      %p78 = por %p76, %p77
      %p79 = scmp.ne.s32.totalorder %s65, %s66
      %p80 = scmp.eq.s32.totalorder %s20, 3
      %p81 = por %p79, %p80
      %p83 = scmp.ne.s32.totalorder %s66, %s82
      %p84 = scmp.eq.s32.totalorder %s20, 0
      %p85 = por %p83, %p84
      %s86 = ssub.s32 %s21, %s33
      %p87 = scmp.eq.s32.totalorder %s86, 0
      %s89 = sadd.s32 %s88, 1
      %s90 = scalar_select %p87, %s88, %s89
      %p93 = pneg %p87
      %p94 = scmp.eq.s32.totalorder %s14, 3
      %p95 = por %p93, %p94
      %p96 = scmp.ne.s32.totalorder %s88, %s91
      %p97 = scmp.eq.s32.totalorder %s14, 0
      %p98 = por %p96, %p97
      %p99 = scmp.ne.s32.totalorder %s88, %s91
      %p100 = scmp.eq.s32.totalorder %s19, 3
      %p101 = por %p99, %p100
      %p102 = scmp.ne.s32.totalorder %s91, %s92
      %p103 = scmp.eq.s32.totalorder %s19, 0
      %p104 = por %p102, %p103
      %p105 = scmp.ne.s32.totalorder %s91, %s92
      %p106 = scmp.eq.s32.totalorder %s20, 3
      %p107 = por %p105, %p106
      %p109 = scmp.ne.s32.totalorder %s92, %s108
      %p110 = scmp.eq.s32.totalorder %s20, 0
      %p111 = por %p109, %p110
      %p112 = scmp.le.s32.totalorder 1, %s14
      %p113 = scmp.lt.s32.totalorder %s14, 5
      %p114 = pnand %p112, %p113
      %p115 = pneg %p114
      // Predicated region
      $region9: #{tpu_custom_call.1} parent=5 // pred_check
        _
      $region10: #{tpu_custom_call.1} parent=5 // pred_check_branch
        %117 = sbr.rel (%p114) target = $region12
      $region11: #{tpu_custom_call.1} parent=5 // pred_region
        %s118 = ssub.s32 %s14, 1
      $region12: #{tpu_custom_call.1} parent=5 // pred_fallthru
        _
      %p119 = scmp.lt.s32.totalorder %s14, 4
      // Predicated region
      $region13: #{tpu_custom_call.1} parent=5 // pred_check
        %p120 = pneg %p119
      $region14: #{tpu_custom_call.1} parent=5 // pred_check_branch
        %122 = sbr.rel (%p120) target = $region16
      $region15: #{tpu_custom_call.1} parent=5 // pred_region
        // Predicated region
        $region17: #{tpu_custom_call.1} parent=15 // pred_check
          %p123 = pneg %p46
        $region18: #{tpu_custom_call.1} parent=15 // pred_check_branch
          %125 = sbr.rel (%p123) target = $region20
        $region19: #{tpu_custom_call.1} parent=15 // pred_region
          %s126 = sand.u32 %s36, 1
          %s127 = scalar_lea.sflag [#allocation5], %s126
          %s128 = sand.u32 %s36, 1
          %s129 = smul.addr %s128, 64
          %s130 = scalar_lea.vmem [#allocation4], %s129
          %s131 = smul.u32 8, %s21
          %s133 = ssub.s32 1024, 1024
          %134 = vsyncadd %s127, %s133
          %s135 = smul.addr %s131, 128
          %s136 = scalar_lea.hbm %s0, %s135
          %s137 = sshll.u32 %s130, 4
          %s138 = int_to_ptr.vmem [resolvable:$true] %s137
          %143 = dma.hbm_to_vmem [thread:$0]  %s136, 1024, %s138, %s127, 128, 128, 8
        $region20: #{tpu_custom_call.1} parent=15 // pred_fallthru
          _
        // Predicated region
        $region21: #{tpu_custom_call.1} parent=15 // pred_check
          %p144 = pneg %p72
        $region22: #{tpu_custom_call.1} parent=15 // pred_check_branch
          %146 = sbr.rel (%p144) target = $region24
        $region23: #{tpu_custom_call.1} parent=15 // pred_region
          %s147 = sand.u32 %s62, 1
          %s148 = scalar_lea.sflag [#allocation7], %s147
          %s149 = sand.u32 %s62, 1
          %s150 = smul.addr %s149, 64
          %s151 = scalar_lea.vmem [#allocation6], %s150
          %s152 = smul.u32 8, %s22
          %s154 = ssub.s32 1024, 1024
          %155 = vsyncadd %s148, %s154
          %s156 = smul.addr %s152, 128
          %s157 = scalar_lea.hbm %s1, %s156
          %s158 = sshll.u32 %s151, 4
          %s159 = int_to_ptr.vmem [resolvable:$true] %s158
          %164 = dma.hbm_to_vmem [thread:$0]  %s157, 1024, %s159, %s148, 128, 128, 8
        $region24: #{tpu_custom_call.1} parent=15 // pred_fallthru
          _
      $region16: #{tpu_custom_call.1} parent=5 // pred_fallthru
        _
      %p165 = scmp.le.s32.totalorder 1, %s14
      %p166 = scmp.lt.s32.totalorder %s14, 5
      %p167 = pnand %p165, %p166
      %p168 = pneg %p167
      // Predicated region
      $region25: #{tpu_custom_call.1} parent=5 // pred_check
        _
      $region26: #{tpu_custom_call.1} parent=5 // pred_check_branch
        %170 = sbr.rel (%p167) target = $region28
      $region27: #{tpu_custom_call.1} parent=5 // pred_region
        %s171 = ssub.s32 %s14, 1
        %s172 = sand.u32 %s39, 1
        %s173 = scalar_lea.sflag [#allocation5], %s172
        %s174 = sand.u32 %s39, 1
        %s175 = smul.addr %s174, 64
        %s176 = scalar_lea.vmem [#allocation4], %s175
        // Predicated region
        $region29: #{tpu_custom_call.1} parent=27 // pred_check
          %p177 = pneg %p52
        $region30: #{tpu_custom_call.1} parent=27 // pred_check_branch
          %179 = sbr.rel (%p177) target = $region32
        $region31: #{tpu_custom_call.1} parent=27 // pred_region
          %180 = dma.done %s173, 1024
        $region32: #{tpu_custom_call.1} parent=27 // pred_fallthru
          _
        %s181 = sand.u32 %s65, 1
        %s182 = scalar_lea.sflag [#allocation7], %s181
        %s183 = sand.u32 %s65, 1
        %s184 = smul.addr %s183, 64
        %s185 = scalar_lea.vmem [#allocation6], %s184
        // Predicated region
        $region33: #{tpu_custom_call.1} parent=27 // pred_check
          %p186 = pneg %p78
        $region34: #{tpu_custom_call.1} parent=27 // pred_check_branch
          %188 = sbr.rel (%p186) target = $region36
        $region35: #{tpu_custom_call.1} parent=27 // pred_region
          %189 = dma.done %s182, 1024
        $region36: #{tpu_custom_call.1} parent=27 // pred_fallthru
          _
        %s190 = sand.u32 %s39, 1
        %s191 = scalar_lea.sflag [#allocation5], %s190
        %s192 = sand.u32 %s39, 1
        %s193 = smul.addr %s192, 64
        %s194 = scalar_lea.vmem [#allocation4], %s193
        %p195 = pneg %p52
        %p196 = pneg %p49
        %s197 = sand.u32 %s65, 1
        %s198 = scalar_lea.sflag [#allocation7], %s197
        %s199 = sand.u32 %s65, 1
        %s200 = smul.addr %s199, 64
        %s201 = scalar_lea.vmem [#allocation6], %s200
        %p202 = pneg %p78
        %p203 = pneg %p75
        %p204 = pneg %p104
        %p205 = pneg %p101
        %s206 = smul.u32 8, %s23
        %p207 = scmp.lt.s32.totalorder %s206, 15
        %s208 = scalar_select %p207, %s206, 15
        %s209 = smul.addr %s208, 8
        %s210 = scalar_lea.vmem %s2, %s209
        %s211 = smul.u32 8, %s23
        %s212 = smul.u32 8, %s24
        %s213 = smul.u32 8, %s23
        %p214 = scmp.lt.s32.totalorder %s213, 15
        %s215 = scalar_select %p214, %s213, 15
        %s216 = smul.addr %s215, 8
        %s217 = scalar_lea.vmem %s2, %s216
        %s218 = smul.u32 8, %s23
        %p219 = scmp.eq.s32.totalorder %s24, 0
        // Predicated region
        $region37: #{tpu_custom_call.1} parent=27 // pred_check
          %p220 = pneg %p219
        $region38: #{tpu_custom_call.1} parent=27 // pred_check_branch
          %222 = sbr.rel (%p220) target = $region40
        $region39: #{tpu_custom_call.1} parent=27 // pred_region
          %vm223 = vcmask 7168
          %224 = vst.msk [vmem:[#allocation2] sm:$0xff] %vm223, -inf
          %225 = vst.msk [vmem:[#allocation2 + $0x8] sm:$0xff] %vm223, -inf
          %226 = vst.msk [vmem:[#allocation2 + $0x10] sm:$0xff] %vm223, -inf
          %227 = vst.msk [vmem:[#allocation2 + $0x18] sm:$0xff] %vm223, -inf
          %228 = vst.msk [vmem:[#allocation2 + $0x20] sm:$0xff] %vm223, -inf
          %229 = vst.msk [vmem:[#allocation2 + $0x28] sm:$0xff] %vm223, -inf
          %230 = vst.msk [vmem:[#allocation2 + $0x30] sm:$0xff] %vm223, -inf
          %231 = vst.msk [vmem:[#allocation2 + $0x38] sm:$0xff] %vm223, -inf
          %232 = vst.msk [vmem:[#allocation3] sm:$0xff] %vm223, 0.0
          %233 = vst.msk [vmem:[#allocation3 + $0x8] sm:$0xff] %vm223, 0.0
          %234 = vst.msk [vmem:[#allocation3 + $0x10] sm:$0xff] %vm223, 0.0
          %235 = vst.msk [vmem:[#allocation3 + $0x18] sm:$0xff] %vm223, 0.0
          %236 = vst.msk [vmem:[#allocation3 + $0x20] sm:$0xff] %vm223, 0.0
          %237 = vst.msk [vmem:[#allocation3 + $0x28] sm:$0xff] %vm223, 0.0
          %238 = vst.msk [vmem:[#allocation3 + $0x30] sm:$0xff] %vm223, 0.0
          %239 = vst.msk [vmem:[#allocation3 + $0x38] sm:$0xff] %vm223, 0.0
        $region40: #{tpu_custom_call.1} parent=27 // pred_fallthru
          _
        %v240 = vld [vmem:[%s176] sm:$0xff]
        %v241 = vld [vmem:[%s176 + $0x8] sm:$0xff]
        %v242 = vld [vmem:[%s176 + $0x10] sm:$0xff]
        %v243 = vld [vmem:[%s176 + $0x18] sm:$0xff]
        %v244 = vld [vmem:[%s176 + $0x20] sm:$0xff]
        %v245 = vld [vmem:[%s176 + $0x28] sm:$0xff]
        %v246 = vld [vmem:[%s176 + $0x30] sm:$0xff]
        %v247 = vld [vmem:[%s176 + $0x38] sm:$0xff]
        %v248 = vld [vmem:[%s185] sm:$0xff]
        %v249 = vld [vmem:[%s185 + $0x8] sm:$0xff]
        %v250 = vld [vmem:[%s185 + $0x10] sm:$0xff]
        %v251 = vld [vmem:[%s185 + $0x18] sm:$0xff]
        %v252 = vld [vmem:[%s185 + $0x20] sm:$0xff]
        %v253 = vld [vmem:[%s185 + $0x28] sm:$0xff]
        %v254 = vld [vmem:[%s185 + $0x30] sm:$0xff]
        %v255 = vld [vmem:[%s185 + $0x38] sm:$0xff]
        %256 = vmatprep.subr.mxu0 0.0
        %257 = vmatpush1.xpose.msra.mxu0 %v248
        %258 = vmatprep.subr.mxu0 0.0
        %259 = vmatpush1.xpose.msra.mxu0 %v249
        %260 = vmatprep.subr.mxu0 0.0
        %261 = vmatpush1.xpose.msra.mxu0 %v250
        %262 = vmatprep.subr.mxu0 0.0
        %263 = vmatpush1.xpose.msra.mxu0 %v251
        %264 = vmatprep.subr.mxu0 0.0
        %265 = vmatpush1.xpose.msra.mxu0 %v252
        %266 = vmatprep.subr.mxu0 0.0
        %267 = vmatpush1.xpose.msra.mxu0 %v253
        %268 = vmatprep.subr.mxu0 0.0
        %269 = vmatpush1.xpose.msra.mxu0 %v254
        %270 = vmatprep.subr.mxu0 0.0
        %271 = vmatpush1.xpose.msra.mxu0 %v255
        %272 = vmatprep.subr.mxu0 0.0
        %273 = vmatpush1.xpose.msra.mxu0 0.0
        %274 = vmatprep.subr.mxu0 0.0
        %275 = vmatpush1.xpose.msra.mxu0 0.0
        %276 = vmatprep.subr.mxu0 0.0
        %277 = vmatpush1.xpose.msra.mxu0 0.0
        %278 = vmatprep.subr.mxu0 0.0
        %279 = vmatpush1.xpose.msra.mxu0 0.0
        %280 = vmatprep.subr.mxu0 0.0
        %281 = vmatpush1.xpose.msra.mxu0 0.0
        %282 = vmatprep.subr.mxu0 0.0
        %283 = vmatpush1.xpose.msra.mxu0 0.0
        %284 = vmatprep.subr.mxu0 0.0
        %285 = vmatpush1.xpose.msra.mxu0 0.0
        %286 = vmatprep.subr.mxu0 0.0
        %287 = vmatpush1.xpose.msra.mxu0 0.0
        %288 = vmatprep.subr.mxu0 0.0
        %289 = vmatpush1.xpose.msra.mxu0 0.0
        %290 = vmatprep.subr.mxu0 0.0
        %291 = vmatpush1.xpose.msra.mxu0 0.0
        %292 = vmatprep.subr.mxu0 0.0
        %293 = vmatpush1.xpose.msra.mxu0 0.0
        %294 = vmatprep.subr.mxu0 0.0
        %295 = vmatpush1.xpose.msra.mxu0 0.0
        %296 = vmatprep.subr.mxu0 0.0
        %297 = vmatpush1.xpose.msra.mxu0 0.0
        %298 = vmatprep.subr.mxu0 0.0
        %299 = vmatpush1.xpose.msra.mxu0 0.0
        %300 = vmatprep.subr.mxu0 0.0
        %301 = vmatpush1.xpose.msra.mxu0 0.0
        %302 = vmatprep.subr.mxu0 0.0
        %303 = vmatpush1.xpose.msra.mxu0 0.0
        %304 = vmatprep.subr.mxu0 0.0
        %305 = vmatpush1.xpose.msra.mxu0 0.0
        %306 = vmatprep.subr.mxu0 0.0
        %307 = vmatpush1.xpose.msra.mxu0 0.0
        %308 = vmatprep.subr.mxu0 0.0
        %309 = vmatpush1.xpose.msra.mxu0 0.0
        %310 = vmatprep.subr.mxu0 0.0
        %311 = vmatpush1.xpose.msra.mxu0 0.0
        %312 = vmatprep.subr.mxu0 0.0
        %313 = vmatpush1.xpose.msra.mxu0 0.0
        %314 = vmatprep.subr.mxu0 0.0
        %315 = vmatpush1.xpose.msra.mxu0 0.0
        %316 = vmatprep.subr.mxu0 0.0
        %317 = vmatpush1.xpose.msra.mxu0 0.0
        %318 = vmatprep.subr.mxu0 0.0
        %319 = vmatpush1.xpose.msra.mxu0 0.0
        %320 = vmatprep.mubr.f32.mxu0 0.0
        %321 = vmatmul.mubr.f32.gmra.mrb[0].mxu0 %v240
        %v322 = vpop.f32.mrb[0].mxu0
        %v323 = vadd.f32 0.0, %v322
        %v324 = vpop.f32.mrb[0].mxu0
        %325 = vmatprep.mubr.f32.mxu0 0.0
        %326 = vmatmul.mubr.f32.gmra.mrb[0].mxu0 %v241
        %v327 = vpop.f32.mrb[0].mxu0
        %v328 = vadd.f32 0.0, %v327
        %v329 = vpop.f32.mrb[0].mxu0
        %330 = vmatprep.mubr.f32.mxu0 0.0
        %331 = vmatmul.mubr.f32.gmra.mrb[0].mxu0 %v242
        %v332 = vpop.f32.mrb[0].mxu0
        %v333 = vadd.f32 0.0, %v332
        %v334 = vpop.f32.mrb[0].mxu0
        %335 = vmatprep.mubr.f32.mxu0 0.0
        %336 = vmatmul.mubr.f32.gmra.mrb[0].mxu0 %v243
        %v337 = vpop.f32.mrb[0].mxu0
        %v338 = vadd.f32 0.0, %v337
        %v339 = vpop.f32.mrb[0].mxu0
        %340 = vmatprep.mubr.f32.mxu0 0.0
        %341 = vmatmul.mubr.f32.gmra.mrb[0].mxu0 %v244
        %v342 = vpop.f32.mrb[0].mxu0
        %v343 = vadd.f32 0.0, %v342
        %v344 = vpop.f32.mrb[0].mxu0
        %345 = vmatprep.mubr.f32.mxu0 0.0
        %346 = vmatmul.mubr.f32.gmra.mrb[0].mxu0 %v245
        %v347 = vpop.f32.mrb[0].mxu0
        %v348 = vadd.f32 0.0, %v347
        %v349 = vpop.f32.mrb[0].mxu0
        %350 = vmatprep.mubr.f32.mxu0 0.0
        %351 = vmatmul.mubr.f32.gmra.mrb[0].mxu0 %v246
        %v352 = vpop.f32.mrb[0].mxu0
        %v353 = vadd.f32 0.0, %v352
        %v354 = vpop.f32.mrb[0].mxu0
        %355 = vmatprep.mubr.f32.mxu0 0.0
        %356 = vmatmul.mubr.f32.gmra.mrb[0].mxu0 %v247
        %v357 = vpop.f32.mrb[0].mxu0
        %v358 = vadd.f32 0.0, %v357
        %v359 = vpop.f32.mrb[0].mxu0
        %360 = vdwg.mxu0
        %v361 = vmul.f32 %v323, 2.0
        %v362 = vmul.f32 %v328, 2.0
        %v363 = vmul.f32 %v333, 2.0
        %v364 = vmul.f32 %v338, 2.0
        %v365 = vmul.f32 %v343, 2.0
        %v366 = vmul.f32 %v348, 2.0
        %v367 = vmul.f32 %v353, 2.0
        %v368 = vmul.f32 %v358, 2.0
        %s369 = smul.u32 %s23, 64
        %v370 = vlaneseq
        %v371 = vshrl.u32 %v370, 7
        %v372 = vadd.s32 %v371, 8
        %v373 = vadd.s32 %v371, 16
        %v374 = vadd.s32 %v371, 24
        %v375 = vadd.s32 %v371, 32
        %v376 = vadd.s32 %v371, 40
        %v377 = vadd.s32 %v371, 48
        %v378 = vadd.s32 %v371, 56
        %v379 = vstv %s369
        %v380 = vadd.s32 %v379, %v371
        %v381 = vadd.s32 %v379, %v372
        %v382 = vadd.s32 %v379, %v373
        %v383 = vadd.s32 %v379, %v374
        %v384 = vadd.s32 %v379, %v375
        %v385 = vadd.s32 %v379, %v376
        %v386 = vadd.s32 %v379, %v377
        %v387 = vadd.s32 %v379, %v378
        %s388 = smul.u32 %s24, 64
        %v389 = vlaneseq
        %v390 = vand.u32 %v389, 127
        %v391 = vstv %s388
        %v392 = vadd.s32 %v391, %v390
        %vm393 = vcmp.eq.s32.totalorder %v380, %v392
        %vm394 = vcmp.eq.s32.totalorder %v381, %v392
        %vm395 = vcmp.eq.s32.totalorder %v382, %v392
        %vm396 = vcmp.eq.s32.totalorder %v383, %v392
        %vm397 = vcmp.eq.s32.totalorder %v384, %v392
        %vm398 = vcmp.eq.s32.totalorder %v385, %v392
        %vm399 = vcmp.eq.s32.totalorder %v386, %v392
        %vm400 = vcmp.eq.s32.totalorder %v387, %v392
        %vm401 = vcmp.ge.s32.totalorder %v392, 120
        %vm402 = vmor %vm393, %vm401
        %vm403 = vmor %vm394, %vm401
        %vm404 = vmor %vm395, %vm401
        %vm405 = vmor %vm396, %vm401
        %vm406 = vmor %vm397, %vm401
        %vm407 = vmor %vm398, %vm401
        %vm408 = vmor %vm399, %vm401
        %vm409 = vmor %vm400, %vm401
        %v410 = vsel %vm402, -1e+30, %v361
        %v411 = vsel %vm403, -1e+30, %v362
        %v412 = vsel %vm404, -1e+30, %v363
        %v413 = vsel %vm405, -1e+30, %v364
        %v414 = vsel %vm406, -1e+30, %v365
        %v415 = vsel %vm407, -1e+30, %v366
        %v416 = vsel %vm408, -1e+30, %v367
        %v417 = vsel %vm409, -1e+30, %v368
        %v418 = vld [vmem:[#allocation2] sm:$0xff]
        %v419 = vld [vmem:[#allocation2 + $0x8] sm:$0xff]
        %v420 = vld [vmem:[#allocation2 + $0x10] sm:$0xff]
        %v421 = vld [vmem:[#allocation2 + $0x18] sm:$0xff]
        %v422 = vld [vmem:[#allocation2 + $0x20] sm:$0xff]
        %v423 = vld [vmem:[#allocation2 + $0x28] sm:$0xff]
        %v424 = vld [vmem:[#allocation2 + $0x30] sm:$0xff]
        %v425 = vld [vmem:[#allocation2 + $0x38] sm:$0xff]
        %vm426 = vcmask 523264
        %v427 = vsel %vm426, %v410, -inf
        %428 = vmax.xlane.f32.xlu0 %v427
        %v429 = vpop.xlane.xlu0 %428
        %v430 = vsel %vm426, %v411, -inf
        %431 = vmax.xlane.f32.xlu0 %v430
        %v432 = vpop.xlane.xlu0 %431
        %v433 = vsel %vm426, %v412, -inf
        %434 = vmax.xlane.f32.xlu0 %v433
        %v435 = vpop.xlane.xlu0 %434
        %v436 = vsel %vm426, %v413, -inf
        %437 = vmax.xlane.f32.xlu0 %v436
        %v438 = vpop.xlane.xlu0 %437
        %v439 = vsel %vm426, %v414, -inf
        %440 = vmax.xlane.f32.xlu0 %v439
        %v441 = vpop.xlane.xlu0 %440
        %v442 = vsel %vm426, %v415, -inf
        %443 = vmax.xlane.f32.xlu0 %v442
        %v444 = vpop.xlane.xlu0 %443
        %v445 = vsel %vm426, %v416, -inf
        %446 = vmax.xlane.f32.xlu0 %v445
        %v447 = vpop.xlane.xlu0 %446
        %v448 = vsel %vm426, %v417, -inf
        %449 = vmax.xlane.f32.xlu0 %v448
        %v450 = vpop.xlane.xlu0 %449
        %v451 = vmax.f32 %v418, %v429
        %v452 = vmax.f32 %v419, %v432
        %v453 = vmax.f32 %v420, %v435
        %v454 = vmax.f32 %v421, %v438
        %v455 = vmax.f32 %v422, %v441
        %v456 = vmax.f32 %v423, %v444
        %v457 = vmax.f32 %v424, %v447
        %v458 = vmax.f32 %v425, %v450
        %v459 = vsub.f32 %v418, %v451
        %v460 = vsub.f32 %v419, %v452
        %v461 = vsub.f32 %v420, %v453
        %v462 = vsub.f32 %v421, %v454
        %v463 = vsub.f32 %v422, %v455
        %v464 = vsub.f32 %v423, %v456
        %v465 = vsub.f32 %v424, %v457
        %v466 = vsub.f32 %v425, %v458
        %v467 = vmul.f32 %v459, 1.442695
        %v468 = vpow.pop %v467
        %v469 = vmul.f32 %v460, 1.442695
        %v470 = vpow.pop %v469
        %v471 = vmul.f32 %v461, 1.442695
        %v472 = vpow.pop %v471
        %v473 = vmul.f32 %v462, 1.442695
        %v474 = vpow.pop %v473
        %v475 = vmul.f32 %v463, 1.442695
        %v476 = vpow.pop %v475
        %v477 = vmul.f32 %v464, 1.442695
        %v478 = vpow.pop %v477
        %v479 = vmul.f32 %v465, 1.442695
        %v480 = vpow.pop %v479
        %v481 = vmul.f32 %v466, 1.442695
        %v482 = vpow.pop %v481
        %v483 = vld [vmem:[#allocation3] sm:$0xff]
        %v484 = vld [vmem:[#allocation3 + $0x8] sm:$0xff]
        %v485 = vld [vmem:[#allocation3 + $0x10] sm:$0xff]
        %v486 = vld [vmem:[#allocation3 + $0x18] sm:$0xff]
        %v487 = vld [vmem:[#allocation3 + $0x20] sm:$0xff]
        %v488 = vld [vmem:[#allocation3 + $0x28] sm:$0xff]
        %v489 = vld [vmem:[#allocation3 + $0x30] sm:$0xff]
        %v490 = vld [vmem:[#allocation3 + $0x38] sm:$0xff]
        %v491 = vmul.f32 %v468, %v483
        %v492 = vmul.f32 %v470, %v484
        %v493 = vmul.f32 %v472, %v485
        %v494 = vmul.f32 %v474, %v486
        %v495 = vmul.f32 %v476, %v487
        %v496 = vmul.f32 %v478, %v488
        %v497 = vmul.f32 %v480, %v489
        %v498 = vmul.f32 %v482, %v490
        %500 = vset.pattern.permute.xlu0 0
        %501 = vperm.xlu0 %500, %v451
        %v502 = vpop.permute.xlu0 %501
        %505 = vset.pattern.permute.xlu0 0
        %506 = vperm.xlu0 %505, %v452
        %v507 = vpop.permute.xlu0 %506
        %510 = vset.pattern.permute.xlu0 0
        %511 = vperm.xlu0 %510, %v453
        %v512 = vpop.permute.xlu0 %511
        %515 = vset.pattern.permute.xlu0 0
        %516 = vperm.xlu0 %515, %v454
        %v517 = vpop.permute.xlu0 %516
        %520 = vset.pattern.permute.xlu0 0
        %521 = vperm.xlu0 %520, %v455
        %v522 = vpop.permute.xlu0 %521
        %525 = vset.pattern.permute.xlu0 0
        %526 = vperm.xlu0 %525, %v456
        %v527 = vpop.permute.xlu0 %526
        %530 = vset.pattern.permute.xlu0 0
        %531 = vperm.xlu0 %530, %v457
        %v532 = vpop.permute.xlu0 %531
        %535 = vset.pattern.permute.xlu0 0
        %536 = vperm.xlu0 %535, %v458
        %v537 = vpop.permute.xlu0 %536
        %v539 = vsub.f32 %v410, %v502
        %v540 = vsub.f32 %v411, %v507
        %v541 = vsub.f32 %v412, %v512
        %v542 = vsub.f32 %v413, %v517
        %v543 = vsub.f32 %v414, %v522
        %v544 = vsub.f32 %v415, %v527
        %v545 = vsub.f32 %v416, %v532
        %v546 = vsub.f32 %v417, %v537
        %v547 = vmul.f32 %v539, 1.442695
        %v548 = vpow.pop %v547
        %v549 = vmul.f32 %v540, 1.442695
        %v550 = vpow.pop %v549
        %v551 = vmul.f32 %v541, 1.442695
        %v552 = vpow.pop %v551
        %v553 = vmul.f32 %v542, 1.442695
        %v554 = vpow.pop %v553
        %v555 = vmul.f32 %v543, 1.442695
        %v556 = vpow.pop %v555
        %v557 = vmul.f32 %v544, 1.442695
        %v558 = vpow.pop %v557
        %v559 = vmul.f32 %v545, 1.442695
        %v560 = vpow.pop %v559
        %v561 = vmul.f32 %v546, 1.442695
        %v562 = vpow.pop %v561
        %v563 = vsel %vm426, %v548, 0.0
        %564 = vadd.xlane.f32.xlu0 %v563
        %v565 = vpop.xlane.xlu0 %564
        %v566 = vsel %vm426, %v550, 0.0
        %567 = vadd.xlane.f32.xlu0 %v566
        %v568 = vpop.xlane.xlu0 %567
        %v569 = vsel %vm426, %v552, 0.0
        %570 = vadd.xlane.f32.xlu0 %v569
        %v571 = vpop.xlane.xlu0 %570
        %v572 = vsel %vm426, %v554, 0.0
        %573 = vadd.xlane.f32.xlu0 %v572
        %v574 = vpop.xlane.xlu0 %573
        %v575 = vsel %vm426, %v556, 0.0
        %576 = vadd.xlane.f32.xlu0 %v575
        %v577 = vpop.xlane.xlu0 %576
        %v578 = vsel %vm426, %v558, 0.0
        %579 = vadd.xlane.f32.xlu0 %v578
        %v580 = vpop.xlane.xlu0 %579
        %v581 = vsel %vm426, %v560, 0.0
        %582 = vadd.xlane.f32.xlu0 %v581
        %v583 = vpop.xlane.xlu0 %582
        %v584 = vsel %vm426, %v562, 0.0
        %585 = vadd.xlane.f32.xlu0 %v584
        %v586 = vpop.xlane.xlu0 %585
        %v587 = vadd.f32 %v491, %v565
        %v588 = vadd.f32 %v492, %v568
        %v589 = vadd.f32 %v493, %v571
        %v590 = vadd.f32 %v494, %v574
        %v591 = vadd.f32 %v495, %v577
        %v592 = vadd.f32 %v496, %v580
        %v593 = vadd.f32 %v497, %v583
        %v594 = vadd.f32 %v498, %v586
        %vm595 = vcmask 7168
        %596 = vst.msk [vmem:[#allocation3] sm:$0xff] %vm595, %v587
        %597 = vst.msk [vmem:[#allocation3 + $0x8] sm:$0xff] %vm595, %v588
        %598 = vst.msk [vmem:[#allocation3 + $0x10] sm:$0xff] %vm595, %v589
        %599 = vst.msk [vmem:[#allocation3 + $0x18] sm:$0xff] %vm595, %v590
        %600 = vst.msk [vmem:[#allocation3 + $0x20] sm:$0xff] %vm595, %v591
        %601 = vst.msk [vmem:[#allocation3 + $0x28] sm:$0xff] %vm595, %v592
        %602 = vst.msk [vmem:[#allocation3 + $0x30] sm:$0xff] %vm595, %v593
        %603 = vst.msk [vmem:[#allocation3 + $0x38] sm:$0xff] %vm595, %v594
        %604 = vst.msk [vmem:[#allocation2] sm:$0xff] %vm595, %v451
        %605 = vst.msk [vmem:[#allocation2 + $0x8] sm:$0xff] %vm595, %v452
        %606 = vst.msk [vmem:[#allocation2 + $0x10] sm:$0xff] %vm595, %v453
        %607 = vst.msk [vmem:[#allocation2 + $0x18] sm:$0xff] %vm595, %v454
        %608 = vst.msk [vmem:[#allocation2 + $0x20] sm:$0xff] %vm595, %v455
        %609 = vst.msk [vmem:[#allocation2 + $0x28] sm:$0xff] %vm595, %v456
        %610 = vst.msk [vmem:[#allocation2 + $0x30] sm:$0xff] %vm595, %v457
        %611 = vst.msk [vmem:[#allocation2 + $0x38] sm:$0xff] %vm595, %v458
        %p612 = scmp.eq.s32.totalorder %s24, 1
        // Predicated region
        $region41: #{tpu_custom_call.1} parent=27 // pred_check
          %p613 = pneg %p612
        $region42: #{tpu_custom_call.1} parent=27 // pred_check_branch
          %615 = sbr.rel (%p613) target = $region44
        $region43: #{tpu_custom_call.1} parent=27 // pred_region
          %v616 = vld [vmem:[#allocation2] sm:$0xff]
          %v617 = vld [vmem:[#allocation2 + $0x8] sm:$0xff]
          %v618 = vld [vmem:[#allocation2 + $0x10] sm:$0xff]
          %v619 = vld [vmem:[#allocation2 + $0x18] sm:$0xff]
          %v620 = vld [vmem:[#allocation2 + $0x20] sm:$0xff]
          %v621 = vld [vmem:[#allocation2 + $0x28] sm:$0xff]
          %v622 = vld [vmem:[#allocation2 + $0x30] sm:$0xff]
          %v623 = vld [vmem:[#allocation2 + $0x38] sm:$0xff]
          %v624 = vld [vmem:[#allocation3] sm:$0xff]
          %v625 = vld [vmem:[#allocation3 + $0x8] sm:$0xff]
          %v626 = vld [vmem:[#allocation3 + $0x10] sm:$0xff]
          %v627 = vld [vmem:[#allocation3 + $0x18] sm:$0xff]
          %v628 = vld [vmem:[#allocation3 + $0x20] sm:$0xff]
          %v629 = vld [vmem:[#allocation3 + $0x28] sm:$0xff]
          %v630 = vld [vmem:[#allocation3 + $0x30] sm:$0xff]
          %v631 = vld [vmem:[#allocation3 + $0x38] sm:$0xff]
          %v632 = vlog2.pop %v624
          %v633 = vmul.f32 %v632, 0.6931472
          %v634 = vlog2.pop %v625
          %v635 = vmul.f32 %v634, 0.6931472
          %v636 = vlog2.pop %v626
          %v637 = vmul.f32 %v636, 0.6931472
          %v638 = vlog2.pop %v627
          %v639 = vmul.f32 %v638, 0.6931472
          %v640 = vlog2.pop %v628
          %v641 = vmul.f32 %v640, 0.6931472
          %v642 = vlog2.pop %v629
          %v643 = vmul.f32 %v642, 0.6931472
          %v644 = vlog2.pop %v630
          %v645 = vmul.f32 %v644, 0.6931472
          %v646 = vlog2.pop %v631
          %v647 = vmul.f32 %v646, 0.6931472
          %v648 = vadd.f32 %v616, %v633
          %v649 = vadd.f32 %v617, %v635
          %v650 = vadd.f32 %v618, %v637
          %v651 = vadd.f32 %v619, %v639
          %v652 = vadd.f32 %v620, %v641
          %v653 = vadd.f32 %v621, %v643
          %v654 = vadd.f32 %v622, %v645
          %v655 = vadd.f32 %v623, %v647
          %656 = vst.msk [vmem:[%s217] sm:$0xff] %vm595, %v648
          %657 = vst.msk [vmem:[%s217 + $0x8] sm:$0xff] %vm595, %v649
          %658 = vst.msk [vmem:[%s217 + $0x10] sm:$0xff] %vm595, %v650
          %659 = vst.msk [vmem:[%s217 + $0x18] sm:$0xff] %vm595, %v651
          %660 = vst.msk [vmem:[%s217 + $0x20] sm:$0xff] %vm595, %v652
          %661 = vst.msk [vmem:[%s217 + $0x28] sm:$0xff] %vm595, %v653
          %662 = vst.msk [vmem:[%s217 + $0x30] sm:$0xff] %vm595, %v654
          %663 = vst.msk [vmem:[%s217 + $0x38] sm:$0xff] %vm595, %v655
        $region44: #{tpu_custom_call.1} parent=27 // pred_fallthru
          _
        %s664 = smul.u32 8, %s23
        %p665 = scmp.lt.s32.totalorder %s664, 15
        %s666 = scalar_select %p665, %s664, 15
        %s667 = smul.addr %s666, 8
        %s668 = scalar_lea.vmem %s2, %s667
        // Predicated region
        $region45: #{tpu_custom_call.1} parent=27 // pred_check
          %p669 = pneg %p101
        $region46: #{tpu_custom_call.1} parent=27 // pred_check_branch
          %671 = sbr.rel (%p669) target = $region48
        $region47: #{tpu_custom_call.1} parent=27 // pred_region
          %s672 = smul.u32 8, %s23
        $region48: #{tpu_custom_call.1} parent=27 // pred_fallthru
          _
      $region28: #{tpu_custom_call.1} parent=5 // pred_fallthru
        _
      %p673 = scmp.le.s32.totalorder 2, %s14
      // Predicated region
      $region49: #{tpu_custom_call.1} parent=5 // pred_check
        %p674 = pneg %p673
      $region50: #{tpu_custom_call.1} parent=5 // pred_check_branch
        %676 = sbr.rel (%p674) target = $region52
      $region51: #{tpu_custom_call.1} parent=5 // pred_region
        %s677 = ssub.s32 %s14, 2
        // Predicated region
        $region53: #{tpu_custom_call.1} parent=51 // pred_check
          %p678 = pneg %p107
        $region54: #{tpu_custom_call.1} parent=51 // pred_check_branch
          %680 = sbr.rel (%p678) target = $region56
        $region55: #{tpu_custom_call.1} parent=51 // pred_region
          %s681 = smul.u32 8, %s25
          %p682 = scmp.lt.s32.totalorder %s681, 15
          %s683 = scalar_select %p682, %s681, 15
          %s684 = smul.addr %s683, 8
          %s685 = scalar_lea.vmem %s2, %s684
        $region56: #{tpu_custom_call.1} parent=51 // pred_fallthru
          _
      $region52: #{tpu_custom_call.1} parent=5 // pred_fallthru
        _
    $region6: #{tpu_custom_call.1} parent=1 // loop_footer
      %s18 = sadd.s32 1, %s14
    $region7: #{tpu_custom_call.1} parent=1 // loop_footer_branch
      %13 = sbr.rel target = $region3
    $region8: #{tpu_custom_call.1} parent=1 // loop_exit
      _
    %686 = vsyncpa [#allocation5], 1
    %s687 = scalar_lea.sflag [#allocation5], 1
    %688 = vsyncpa %s687, 1
    %689 = vsyncpa [#allocation7], 1
    %s690 = scalar_lea.sflag [#allocation7], 1
    %691 = vsyncpa %s690, 1

</llo_original>
